<compile_context>
chip_gen: v7x
topology: tpu7x:2x2x1
jax: 0.10.0
libtpu: 0.0.40
codegen_flags: <defaults>
</compile_context>

<pallas_src>
import functools

import jax
import jax.numpy as jnp
from jax.experimental import pallas as pl
from jax.experimental.pallas import tpu as pltpu


def _round_up(x: int, m: int) -> int:
    return ((x + m - 1) // m) * m


def _cdiv(a: int, b: int) -> int:
    return -(-a // b)


def _vmem_budget():
    """(physical VMEM bytes, vmem_limit_bytes to request) for this chip."""
    try:
        cap = pltpu.get_tpu_info().vmem_capacity_bytes
    except Exception:
        cap = 64 * 1024 * 1024  # conservative fallback (v7x per-TC VMEM)
    # ~75% of physical with headroom: ~96 MiB on v5e/v6e (128 MiB), ~48 MiB on v7x.
    limit = min(int(cap * 0.75), 100 * 1024 * 1024)
    return cap, limit


def _choose_param_tiles(C: int, D: int, vmem_cap: int, vmem_limit: int,
                        tk_override=None):
    """Pick (tn, tk). These determine the one-time weight/bias padding layout."""
    Cp_full = _round_up(C, 128)
    tn = min(512, Cp_full)
    # v7x (64 MiB VMEM, 2 TensorCores): if padded C fits a single tile, split N in
    # two so both cores get a "parallel" tile even when the M grid is 1.
    if vmem_cap <= 64 * 1024 * 1024 and tn == Cp_full and Cp_full >= 256:
        tn = _round_up(Cp_full // 2, 128)

    Dp128 = _round_up(D, 128)
    if tk_override is not None:
        tk = min(_round_up(tk_override, 128), Dp128)
    else:
        # VMEM budget: double-buffered x & w K-slabs + resident output + bias,
        # using a worst-case tm for the estimate.  No scratch accumulator anymore.
        tm_budget = 512
        fixed = 2 * 4 * tm_budget * tn + 2 * 4 * tn
        per_k = 2 * 4 * (tm_budget + tn)
        tk_cap = max(128, ((vmem_limit - fixed) // per_k) // 128 * 128)
        tk_cap = min(tk_cap, 2048)
        # Balance K tiles so the last tile isn't mostly padding.
        n_k = _cdiv(Dp128, tk_cap)
        tk = _round_up(_cdiv(Dp128, n_k), 128)
    return tn, tk


def prepare_linear_params(weight, bias, *, tn: int, tk: int):
    """One-time parameter prep (done at load time, NOT per forward call):
    transpose PyTorch (C, D) weight to (D, C) and zero-pad both to tile multiples."""
    C, D = weight.shape
    Dp = _round_up(D, tk)
    Cp = _round_up(C, tn)
    wp = jnp.zeros((Dp, Cp), weight.dtype).at[:D, :C].set(weight.T)
    bp = jnp.zeros((1, Cp), bias.dtype).at[0, :C].set(bias)
    return wp, bp


def _linear_kernel_single_k(x_ref, w_ref, b_ref, o_ref):
    """Whole K dim in one tile: branch-free, no accumulation, no zero fill."""
    o_ref[...] = (
        jnp.dot(x_ref[...], w_ref[...], preferred_element_type=jnp.float32)
        + b_ref[...]
    ).astype(o_ref.dtype)


def _linear_kernel_multi_k(x_ref, w_ref, b_ref, o_ref):
    """K-tiled reduction. The output block index is constant over k, so o_ref is
    resident in VMEM across the K axis and we accumulate into it directly.
    NOTE: requires an f32 output dtype (guaranteed by the wrapper)."""
    k = pl.program_id(2)
    contrib = jnp.dot(x_ref[...], w_ref[...], preferred_element_type=jnp.float32)

    @pl.when(k == 0)
    def _():
        o_ref[...] = contrib          # assign: saves a zero-fill + VPU add

    @pl.when(k > 0)
    def _():
        o_ref[...] += contrib

    @pl.when(k == pl.num_programs(2) - 1)
    def _():
        o_ref[...] += b_ref[...]      # bias added exactly once


@functools.partial(
    jax.jit,
    static_argnames=("num_classes", "tn", "tk", "tm_cap", "vmem_limit_bytes"),
)
def _linear_forward_padded(x, w_padded, b_padded, *, num_classes, tn, tk,
                           tm_cap=512, vmem_limit_bytes=48 * 1024 * 1024):
    """y = x @ W^T + b with pre-padded, pre-transposed (Dp, Cp) weight in HBM."""
    B, D = x.shape
    Dp, Cp = w_padded.shape

    # Balanced M tiles so an awkward B doesn't leave a mostly-padding last tile.
    n_m = _cdiv(B, tm_cap)
    tm = min(tm_cap, _round_up(_cdiv(B, n_m), 8))
    Bp = _round_up(B, tm)

    xp = x
    if Bp != B or Dp != D:
        xp = jnp.pad(x, ((0, Bp - B), (0, Dp - D)))   # skipped when aligned

    grid_m, grid_n, grid_k = Bp // tm, Cp // tn, Dp // tk

    if grid_k == 1:
        kernel = _linear_kernel_single_k
        grid = (grid_m, grid_n)
        in_specs = [
            pl.BlockSpec((tm, tk), lambda i, j: (i, 0)),   # x
            pl.BlockSpec((tk, tn), lambda i, j: (0, j)),   # W^T (pre-transposed)
            pl.BlockSpec((1, tn), lambda i, j: (0, j)),    # bias
        ]
        out_spec = pl.BlockSpec((tm, tn), lambda i, j: (i, j))
        dim_sem = ("parallel", "parallel")
    else:
        kernel = _linear_kernel_multi_k
        grid = (grid_m, grid_n, grid_k)
        in_specs = [
            pl.BlockSpec((tm, tk), lambda i, j, k: (i, k)),   # x
            pl.BlockSpec((tk, tn), lambda i, j, k: (k, j)),   # W^T (pre-transposed)
            pl.BlockSpec((1, tn), lambda i, j, k: (0, j)),    # bias
        ]
        out_spec = pl.BlockSpec((tm, tn), lambda i, j, k: (i, j))
        dim_sem = ("parallel", "parallel", "arbitrary")

    out = pl.pallas_call(
        kernel,
        out_shape=jax.ShapeDtypeStruct((Bp, Cp), jnp.float32),
        grid_spec=pltpu.PrefetchScalarGridSpec(
            num_scalar_prefetch=0,
            grid=grid,
            in_specs=in_specs,
            out_specs=out_spec,
        ),
        compiler_params=pltpu.CompilerParams(
            dimension_semantics=dim_sem,
            vmem_limit_bytes=vmem_limit_bytes,
        ),
    )(xp, w_padded, b_padded)

    if Bp != B or Cp != num_classes:
        out = out[:B, :num_classes]
    return out


class PallasLinear:
    """Equivalent of TorchModel (a single nn.Linear). Parameters are transposed and
    padded once at construction; the per-call path only (maybe) pads x."""

    # Below this many MACs the per-grid-step Pallas overhead dominates; plain XLA
    # is strictly faster for such tiny problems.
    _TINY_MACS = 1 << 16

    def __init__(self, weight, bias, *, tk_override=None):
        assert weight.dtype == jnp.float32 and bias.dtype == jnp.float32
        self.weight = weight
        self.bias = bias
        self.num_classes, self.input_size = weight.shape
        cap, limit = _vmem_budget()
        self.vmem_limit_bytes = int(limit)
        self.tn, self.tk = _choose_param_tiles(
            self.num_classes, self.input_size, cap, limit, tk_override=tk_override
        )
        self.w_padded, self.b_padded = prepare_linear_params(
            weight, bias, tn=self.tn, tk=self.tk
        )

    def __call__(self, x, *, force_pallas=False):
        B, D = x.shape
        assert D == self.input_size, "weight in_features must match x feature dim"
        if (not force_pallas
                and B * D * self.num_classes < self._TINY_MACS):
            # Tiny-problem fast path: bypass pallas_call entirely.
            return x @ self.weight.T + self.bias
        return _linear_forward_padded(
            x, self.w_padded, self.b_padded,
            num_classes=self.num_classes, tn=self.tn, tk=self.tk,
            vmem_limit_bytes=self.vmem_limit_bytes,
        )


if __name__ == "__main__":
    key = jax.random.PRNGKey(0)
    kx1, kw1, kb1, kx2, kw2, kb2 = jax.random.split(key, 6)

    # Case 1: small demo-like shapes -> single-K branch-free kernel.
    B1, D1, C1 = 16, 32, 8
    bound1 = 1.0 / (D1 ** 0.5)
    x1 = jax.random.normal(kx1, (B1, D1), dtype=jnp.float32)
    w1 = jax.random.uniform(kw1, (C1, D1), jnp.float32, -bound1, bound1)
    b1 = jax.random.uniform(kb1, (C1,), jnp.float32, -bound1, bound1)
    model1 = PallasLinear(w1, b1)
    out1 = model1(x1, force_pallas=True)          # exercise the Pallas kernel
    jax.block_until_ready(out1)
    ref1 = x1 @ w1.T + b1
    assert jnp.allclose(out1, ref1, atol=1e-5, rtol=1e-5), "mismatch (single-K path)"

    # Case 2: multi-K-tile path (resident-accumulator kernel), small forced tk.
    B2, D2, C2 = 32, 384, 16
    bound2 = 1.0 / (D2 ** 0.5)
    x2 = jax.random.normal(kx2, (B2, D2), dtype=jnp.float32)
    w2 = jax.random.uniform(kw2, (C2, D2), jnp.float32, -bound2, bound2)
    b2 = jax.random.uniform(kb2, (C2,), jnp.float32, -bound2, bound2)
    model2 = PallasLinear(w2, b2, tk_override=128)   # D=384 -> K grid of 3
    out2 = model2(x2, force_pallas=True)
    jax.block_until_ready(out2)
    ref2 = x2 @ w2.T + b2
    assert jnp.allclose(out2, ref2, atol=1e-5, rtol=1e-5), "mismatch (multi-K path)"

    print("KERNEL_OK")
</pallas_src>

<mosaic_0001>
module attributes {stable_mosaic.version = 11 : i64} {
  func.func @_linear_kernel_single_k(%arg0: i32, %arg1: i32, %arg2: memref<16x128xf32, #tpu.memory_space<vmem>>, %arg3: memref<128x128xf32, #tpu.memory_space<vmem>>, %arg4: memref<1x128xf32, #tpu.memory_space<vmem>>, %arg5: memref<16x128xf32, #tpu.memory_space<vmem>>) attributes {dimension_semantics = [#tpu.dimension_semantics<parallel>, #tpu.dimension_semantics<parallel>], iteration_bounds = array<i64: 1, 1>, scalar_prefetch = 0 : i64, scratch_operands = 0 : i64, tpu.core_type = #tpu.core_type<tc>, window_params = [{transform_indices = @transform_0, window_bounds = array<i64: 16, 128>}, {transform_indices = @transform_1, window_bounds = array<i64: 128, 128>}, {transform_indices = @transform_2, window_bounds = array<i64: 1, 128>}, {transform_indices = @transform_3, window_bounds = array<i64: 16, 128>}]} {
    %c0 = arith.constant 0 : index
    %c0_0 = arith.constant 0 : index
    %0 = vector.load %arg2[%c0, %c0_0] : memref<16x128xf32, #tpu.memory_space<vmem>>, vector<16x128xf32>
    %c0_1 = arith.constant 0 : index
    %c0_2 = arith.constant 0 : index
    %1 = vector.load %arg3[%c0_1, %c0_2] : memref<128x128xf32, #tpu.memory_space<vmem>>, vector<128x128xf32>
    %cst = arith.constant dense<0.000000e+00> : vector<16x128xf32>
    %2 = tpu.matmul %0, %1, %cst {dimension_numbers = #tpu.dot_dimension_numbers<[1], [0], [0], [1], [0, 0, 1, 1], [], []>} : vector<16x128xf32>, vector<128x128xf32>, vector<16x128xf32> -> vector<16x128xf32>
    %c0_3 = arith.constant 0 : index
    %c0_4 = arith.constant 0 : index
    %3 = vector.load %arg4[%c0_3, %c0_4] : memref<1x128xf32, #tpu.memory_space<vmem>>, vector<1x128xf32>
    %4 = vector.broadcast %3 : vector<1x128xf32> to vector<16x128xf32>
    %5 = arith.addf %2, %4 : vector<16x128xf32>
    %c0_5 = arith.constant 0 : index
    %c0_6 = arith.constant 0 : index
    %6 = vector.load %arg5[%c0_5, %c0_6] : memref<16x128xf32, #tpu.memory_space<vmem>>, vector<16x128xf32>
    tpu.vector_store %arg5[%c0_5, %c0_6], %5 {strides = array<i32>} : memref<16x128xf32, #tpu.memory_space<vmem>>, vector<16x128xf32>,
    return
  }
  func.func @transform_0(%arg0: i32, %arg1: i32) -> (i32, i32) {
    %c0_i32 = arith.constant 0 : i32
    %c0_i32_0 = arith.constant 0 : i32
    return %arg0, %c0_i32 : i32, i32
  }
  func.func @transform_1(%arg0: i32, %arg1: i32) -> (i32, i32) {
    %c0_i32 = arith.constant 0 : i32
    %c0_i32_0 = arith.constant 0 : i32
    return %c0_i32, %arg1 : i32, i32
  }
  func.func @transform_2(%arg0: i32, %arg1: i32) -> (i32, i32) {
    %c0_i32 = arith.constant 0 : i32
    %c0_i32_0 = arith.constant 0 : i32
    return %c0_i32, %arg1 : i32, i32
  }
  func.func @transform_3(%arg0: i32, %arg1: i32) -> (i32, i32) {
    %c0_i32 = arith.constant 0 : i32
    return %arg0, %arg1 : i32, i32
  }
}

</mosaic_0001>

<llo_original>
// kernel: _linear_forward_padded.1
$region0: #{_linear_forward_padded.1}
  #allocation0 [shape = 'u32[]', space=smem, size = 0x4, offset = 0x4, fixed_abs, tag = 'smem constant byte address 0x4 - core index']
  #allocation1 [shape = 'u32[144,128]{1,0:T(1,128)}', space=vmem, size = 0x12000, scoped, tag = 'internal scratch']
  %s0 = inlined_call_operand.vmem [shape: f32[16,128], index: 0, kind: input, shape index: {}]
  %s1 = inlined_call_operand.hbm [shape: f32[128,128], index: 1, kind: input, shape index: {}]
  %s2 = inlined_call_operand.vmem [shape: f32[1,128], index: 2, kind: input, shape index: {}]
  %s3 = inlined_call_operand.vmem [shape: f32[16,128], index: 3, kind: output, shape index: {}]
  %s4 = sld [smem:[#allocation0]]
  $region26: #{_linear_forward_padded.1} parent=0
    _
  %s6 = ssub.s32 1, %s4
  %s7 = scalar_select 0, %s6, %s4
  $region1: #{_linear_forward_padded.1} parent=0
    #allocation2 [shape = 'u8[65536]{0}', space=vmem, size = 0x10000, scoped, tag = 'input window, operand 1, single buffered']
    #allocation3 [shape = 's32[1]{0}', space=sflag, size = 0x4, scoped, tag = 'scoped memory for _linear_forward_padded.1']
    %8 = vsyncpa [#allocation3], 0
    // Predicated region
    $region2: #{_linear_forward_padded.1} parent=1 // pred_check
      _
    $region3: #{_linear_forward_padded.1} parent=1 // pred_check_branch
      %10 = sbr.rel (0) target = $region5
    $region4: #{_linear_forward_padded.1} parent=1 // pred_region
      _
    $region5: #{_linear_forward_padded.1} parent=1 // pred_fallthru
      _
    // Predicated region
    $region6: #{_linear_forward_padded.1} parent=1 // pred_check
      _
    $region7: #{_linear_forward_padded.1} parent=1 // pred_check_branch
      %12 = sbr.rel (0) target = $region9
    $region8: #{_linear_forward_padded.1} parent=1 // pred_region
      %s14 = ssub.s32 2048, 2048
      %15 = vsyncadd [#allocation3], %s14
      %s16 = sshll.u32 [#allocation2], 4
      %s17 = int_to_ptr.vmem [resolvable:$true] %s16
      %22 = dma.hbm_to_vmem [thread:$0]  %s1, 2048, %s17, [#allocation3], 128, 128, 8
    $region9: #{_linear_forward_padded.1} parent=1 // pred_fallthru
      _
    // Predicated region
    $region10: #{_linear_forward_padded.1} parent=1 // pred_check
      _
    $region11: #{_linear_forward_padded.1} parent=1 // pred_check_branch
      %24 = sbr.rel (0) target = $region13
    $region12: #{_linear_forward_padded.1} parent=1 // pred_region
      _
    $region13: #{_linear_forward_padded.1} parent=1 // pred_fallthru
      _
    // Predicated region
    $region14: #{_linear_forward_padded.1} parent=1 // pred_check
      _
    $region15: #{_linear_forward_padded.1} parent=1 // pred_check_branch
      %26 = sbr.rel (0) target = $region17
    $region16: #{_linear_forward_padded.1} parent=1 // pred_region
      %27 = dma.done [#allocation3], 2048
    $region17: #{_linear_forward_padded.1} parent=1 // pred_fallthru
      _
    %v28 = vld [vmem:[%s0] sm:$0xff]
    %v29 = vld [vmem:[%s0 + $0x8] sm:$0xff]
    %v30 = vld [vmem:[#allocation2] sm:$0xff]
    %v31 = vld [vmem:[#allocation2 + $0x8] sm:$0xff]
    %v32 = vld [vmem:[#allocation2 + $0x10] sm:$0xff]
    %v33 = vld [vmem:[#allocation2 + $0x18] sm:$0xff]
    %v34 = vld [vmem:[#allocation2 + $0x20] sm:$0xff]
    %v35 = vld [vmem:[#allocation2 + $0x28] sm:$0xff]
    %v36 = vld [vmem:[#allocation2 + $0x30] sm:$0xff]
    %v37 = vld [vmem:[#allocation2 + $0x38] sm:$0xff]
    %v38 = vld [vmem:[#allocation2 + $0x40] sm:$0xff]
    %v39 = vld [vmem:[#allocation2 + $0x48] sm:$0xff]
    %v40 = vld [vmem:[#allocation2 + $0x50] sm:$0xff]
    %v41 = vld [vmem:[#allocation2 + $0x58] sm:$0xff]
    %v42 = vld [vmem:[#allocation2 + $0x60] sm:$0xff]
    %v43 = vld [vmem:[#allocation2 + $0x68] sm:$0xff]
    %v44 = vld [vmem:[#allocation2 + $0x70] sm:$0xff]
    %v45 = vld [vmem:[#allocation2 + $0x78] sm:$0xff]
    %v46 = vld [vmem:[%s2] sm:$0x1]
    %v48 = vlaneseq
    %v49 = vshrl.u32 %v48, 7
    %v50 = vsub.s32 0, %v49
    %v51 = vrot.slane %v46, %v50
    %53 = vmatprep.subr.mxu0 0.0
    %54 = vmatpush1.msra.mxu0 %v30
    %55 = vmatprep.subr.mxu0 0.0
    %56 = vmatpush1.msra.mxu0 %v31
    %57 = vmatprep.subr.mxu0 0.0
    %58 = vmatpush1.msra.mxu0 %v32
    %59 = vmatprep.subr.mxu0 0.0
    %60 = vmatpush1.msra.mxu0 %v33
    %61 = vmatprep.subr.mxu0 0.0
    %62 = vmatpush1.msra.mxu0 %v34
    %63 = vmatprep.subr.mxu0 0.0
    %64 = vmatpush1.msra.mxu0 %v35
    %65 = vmatprep.subr.mxu0 0.0
    %66 = vmatpush1.msra.mxu0 %v36
    %67 = vmatprep.subr.mxu0 0.0
    %68 = vmatpush1.msra.mxu0 %v37
    %69 = vmatprep.subr.mxu0 0.0
    %70 = vmatpush1.msra.mxu0 %v38
    %71 = vmatprep.subr.mxu0 0.0
    %72 = vmatpush1.msra.mxu0 %v39
    %73 = vmatprep.subr.mxu0 0.0
    %74 = vmatpush1.msra.mxu0 %v40
    %75 = vmatprep.subr.mxu0 0.0
    %76 = vmatpush1.msra.mxu0 %v41
    %77 = vmatprep.subr.mxu0 0.0
    %78 = vmatpush1.msra.mxu0 %v42
    %79 = vmatprep.subr.mxu0 0.0
    %80 = vmatpush1.msra.mxu0 %v43
    %81 = vmatprep.subr.mxu0 0.0
    %82 = vmatpush1.msra.mxu0 %v44
    %83 = vmatprep.subr.mxu0 0.0
    %84 = vmatpush1.msra.mxu0 %v45
    %85 = vmatprep.subr.mxu0 0.0
    %86 = vmatpush1.msra.mxu0 0.0
    %87 = vmatprep.subr.mxu0 0.0
    %88 = vmatpush1.msra.mxu0 0.0
    %89 = vmatprep.subr.mxu0 0.0
    %90 = vmatpush1.msra.mxu0 0.0
    %91 = vmatprep.subr.mxu0 0.0
    %92 = vmatpush1.msra.mxu0 0.0
    %93 = vmatprep.subr.mxu0 0.0
    %94 = vmatpush1.msra.mxu0 0.0
    %95 = vmatprep.subr.mxu0 0.0
    %96 = vmatpush1.msra.mxu0 0.0
    %97 = vmatprep.subr.mxu0 0.0
    %98 = vmatpush1.msra.mxu0 0.0
    %99 = vmatprep.subr.mxu0 0.0
    %100 = vmatpush1.msra.mxu0 0.0
    %101 = vmatprep.subr.mxu0 0.0
    %102 = vmatpush1.msra.mxu0 0.0
    %103 = vmatprep.subr.mxu0 0.0
    %104 = vmatpush1.msra.mxu0 0.0
    %105 = vmatprep.subr.mxu0 0.0
    %106 = vmatpush1.msra.mxu0 0.0
    %107 = vmatprep.subr.mxu0 0.0
    %108 = vmatpush1.msra.mxu0 0.0
    %109 = vmatprep.subr.mxu0 0.0
    %110 = vmatpush1.msra.mxu0 0.0
    %111 = vmatprep.subr.mxu0 0.0
    %112 = vmatpush1.msra.mxu0 0.0
    %113 = vmatprep.subr.mxu0 0.0
    %114 = vmatpush1.msra.mxu0 0.0
    %115 = vmatprep.subr.mxu0 0.0
    %116 = vmatpush1.msra.mxu0 0.0
    %117 = vmatprep.mubr.f32.mxu0 0.0
    %118 = vmatmul.mubr.f32.gmra.mrb[0].mxu0 %v28
    %v119 = vpop.f32.mrb[0].mxu0
    %v120 = vadd.f32 %v51, %v119
    %v121 = vpop.f32.mrb[0].mxu0
    %122 = vmatprep.mubr.f32.mxu0 0.0
    %123 = vmatmul.mubr.f32.gmra.mrb[0].mxu0 %v29
    %v124 = vpop.f32.mrb[0].mxu0
    %v125 = vadd.f32 %v51, %v124
    %v126 = vpop.f32.mrb[0].mxu0
    %127 = vdwg.mxu0
    %128 = vst [vmem:[%s3] sm:$0xff] %v120
    %129 = vst [vmem:[%s3 + $0x8] sm:$0xff] %v125
    // Predicated region
    $region18: #{_linear_forward_padded.1} parent=1 // pred_check
      _
    $region19: #{_linear_forward_padded.1} parent=1 // pred_check_branch
      %131 = sbr.rel (0) target = $region21
    $region20: #{_linear_forward_padded.1} parent=1 // pred_region
      _
    $region21: #{_linear_forward_padded.1} parent=1 // pred_fallthru
      _
    // Predicated region
    $region22: #{_linear_forward_padded.1} parent=1 // pred_check
      _
    $region23: #{_linear_forward_padded.1} parent=1 // pred_check_branch
      %133 = sbr.rel (0) target = $region25
    $region24: #{_linear_forward_padded.1} parent=1 // pred_region
      _
    $region25: #{_linear_forward_padded.1} parent=1 // pred_fallthru
      _
    %134 = vsyncpa [#allocation3], 1

</llo_original>
